<compile_context>
chip_gen: v5e
topology: v5e:2x2
jax: 0.10.0
libtpu: 0.0.40
codegen_flags: <defaults>
</compile_context>

<pallas_src>
import math

import jax
import jax.numpy as jnp
from jax.experimental import pallas as pl
from jax.experimental.pallas import tpu as pltpu


def _range_norm_kernel(x_ref, o_ref):
    """One (TB, D) row-tile: per-row min/max over the last dim, then rescale.

    Compute in f32: min/max are XLU lane-reduces, the rescale is factored as
    per-row scale/bias so the per-element cost is 1 mul + 1 add (VALU) and
    only TB divides total (instead of TB*D).
    """
    x = x_ref[...].astype(jnp.float32)
    mn = jnp.min(x, axis=-1, keepdims=True)          # XLU
    mx = jnp.max(x, axis=-1, keepdims=True)          # XLU
    inv = 1.0 / (mx - mn)                            # one divide per row
    scale = 2.0 * inv
    bias = -(mn + mx) * inv
    o_ref[...] = (x * scale + bias).astype(o_ref.dtype)


def range_norm(x, *, max_tile_rows=1024, tile_vmem_budget_bytes=4 * 1024 * 1024):
    """RangeNorm over the last dimension of `x` (any leading shape)."""
    orig_shape = x.shape
    D = orig_shape[-1]
    R = int(math.prod(orig_shape[:-1])) if len(orig_shape) > 1 else 1
    x2 = x.reshape(R, D)

    # --- choose the row-tile size -------------------------------------------
    # Budget one tile so the f32 compute copy (+ double-buffered in/out tiles)
    # stays comfortably under the scoped VMEM limit on all of v5e/v6e/v7x.
    bytes_per_row = D * 4  # f32 compute copy
    rows_by_vmem = max(8, tile_vmem_budget_bytes // max(bytes_per_row, 1))
    TB = min(max_tile_rows, rows_by_vmem, R)
    if TB < R:
        # Second-minor block dim must be a multiple of 8 when it is not the
        # full array extent.
        TB = max(8, (TB // 8) * 8)
    # else TB == R: block dim equals the full array dim -> always legal.

    grid = (pl.cdiv(R, TB),)  # partial edge block handled by Pallas (no pad copy)
    itemsize = jnp.dtype(x.dtype).itemsize

    out = pl.pallas_call(
        _range_norm_kernel,
        out_shape=jax.ShapeDtypeStruct((R, D), x.dtype),
        grid=grid,
        in_specs=[pl.BlockSpec((TB, D), lambda i: (i, 0))],
        out_specs=pl.BlockSpec((TB, D), lambda i: (i, 0)),
        compiler_params=pltpu.CompilerParams(
            dimension_semantics=("parallel",),
            vmem_limit_bytes=48 * 1024 * 1024,  # headroom under v7x's 64 MiB
        ),
        cost_estimate=pl.CostEstimate(
            flops=5 * R * D,               # min, max, mul, add per elem (+row divides)
            transcendentals=0,
            bytes_accessed=2 * R * D * itemsize,
        ),
    )(x2)

    return out.reshape(orig_shape)


def range_norm_reference(x):
    """Pure-JAX reference mirroring the PyTorch forward exactly."""
    mn = jnp.min(x, axis=-1, keepdims=True)
    mx = jnp.max(x, axis=-1, keepdims=True)
    return (2.0 * x - (mn + mx)) / (mx - mn)


if __name__ == "__main__":
    # Small shape consistent with the module: RangeNorm normalizes the last
    # dim of an arbitrary tensor — (batch=4, seq=8, hidden=256).
    key = jax.random.PRNGKey(0)
    x = jax.random.normal(key, (4, 8, 256), jnp.float32)

    out = jax.block_until_ready(range_norm(x))
    ref = range_norm_reference(x)
    assert out.shape == x.shape
    assert jnp.allclose(out, ref, atol=1e-5, rtol=1e-5), "mismatch vs reference"

    # Exercise the multi-block path with a non-divisible row count (partial
    # edge block, no padding copy).
    x_big = jax.random.normal(jax.random.PRNGKey(1), (3, 700, 128), jnp.float32)
    out_big = jax.block_until_ready(range_norm(x_big))
    ref_big = range_norm_reference(x_big)
    assert jnp.allclose(out_big, ref_big, atol=1e-5, rtol=1e-5), "tiled path mismatch"

    print("KERNEL_OK")
</pallas_src>

<mosaic_0001>
module attributes {stable_mosaic.version = 11 : i64} {
  func.func @_range_norm_kernel(%arg0: i32, %arg1: memref<32x256xf32, #tpu.memory_space<vmem>>, %arg2: memref<32x256xf32, #tpu.memory_space<vmem>>) attributes {dimension_semantics = [#tpu.dimension_semantics<parallel>], iteration_bounds = array<i64: 1>, scalar_prefetch = 0 : i64, scratch_operands = 0 : i64, tpu.core_type = #tpu.core_type<tc>, window_params = [{transform_indices = @transform_0, window_bounds = array<i64: 32, 256>}, {transform_indices = @transform_1, window_bounds = array<i64: 32, 256>}]} {
    %c0 = arith.constant 0 : index
    %c0_0 = arith.constant 0 : index
    %0 = vector.load %arg1[%c0, %c0_0] : memref<32x256xf32, #tpu.memory_space<vmem>>, vector<32x256xf32>
    %cst = arith.constant dense<0x7F800000> : vector<32xf32>
    %1 = vector.multi_reduction <minimumf>, %0, %cst [1] : vector<32x256xf32> to vector<32xf32>
    %2 = vector.shape_cast %1 : vector<32xf32> to vector<32x1xf32>
    %cst_1 = arith.constant dense<0xFF800000> : vector<32xf32>
    %3 = vector.multi_reduction <maximumf>, %0, %cst_1 [1] : vector<32x256xf32> to vector<32xf32>
    %4 = vector.shape_cast %3 : vector<32xf32> to vector<32x1xf32>
    %5 = arith.subf %4, %2 : vector<32x1xf32>
    %cst_2 = arith.constant 1.000000e+00 : f32
    %6 = vector.broadcast %cst_2 : f32 to vector<32x1xf32>
    %7 = arith.divf %6, %5 : vector<32x1xf32>
    %cst_3 = arith.constant 2.000000e+00 : f32
    %8 = vector.broadcast %cst_3 : f32 to vector<32x1xf32>
    %9 = arith.mulf %8, %7 : vector<32x1xf32>
    %10 = arith.addf %2, %4 : vector<32x1xf32>
    %cst_4 = arith.constant 0.000000e+00 : f32
    %11 = vector.broadcast %cst_4 : f32 to vector<32x1xf32>
    %12 = arith.subf %11, %10 : vector<32x1xf32>
    %13 = arith.mulf %12, %7 : vector<32x1xf32>
    %14 = vector.broadcast %9 : vector<32x1xf32> to vector<32x256xf32>
    %15 = arith.mulf %0, %14 : vector<32x256xf32>
    %16 = vector.broadcast %13 : vector<32x1xf32> to vector<32x256xf32>
    %17 = arith.addf %15, %16 : vector<32x256xf32>
    %c0_5 = arith.constant 0 : index
    %c0_6 = arith.constant 0 : index
    %18 = vector.load %arg2[%c0_5, %c0_6] : memref<32x256xf32, #tpu.memory_space<vmem>>, vector<32x256xf32>
    tpu.vector_store %arg2[%c0_5, %c0_6], %17 {strides = array<i32>} : memref<32x256xf32, #tpu.memory_space<vmem>>, vector<32x256xf32>,
    return
  }
  func.func @transform_0(%arg0: i32) -> (i32, i32) {
    %c0_i32 = arith.constant 0 : i32
    %c0_i32_0 = arith.constant 0 : i32
    return %arg0, %c0_i32 : i32, i32
  }
  func.func @transform_1(%arg0: i32) -> (i32, i32) {
    %c0_i32 = arith.constant 0 : i32
    %c0_i32_0 = arith.constant 0 : i32
    return %arg0, %c0_i32 : i32, i32
  }
}

</mosaic_0001>

<llo_original>
// kernel: tpu_custom_call.1
$region0: #{tpu_custom_call.1}
  #allocation0 [shape = 'u32[]', space=smem, size = 0x4, offset = 0x4, fixed_abs, tag = 'smem constant byte address 0x4 - core index']
  #allocation1 [shape = 'u32[72,128]{1,0:T(1,128)}', space=vmem, size = 0x9000, scoped, tag = 'internal scratch']
  %s0 = inlined_call_operand.hbm [shape: f32[32,256], index: 0, kind: input, shape index: {}]
  %s1 = inlined_call_operand.hbm [shape: f32[32,256], index: 1, kind: output, shape index: {}]
  %s2 = sld [smem:[#allocation0]]
  $region18: #{tpu_custom_call.1} parent=0
    _
  %s4 = ssub.s32 1, %s2
  %s5 = scalar_select 0, %s4, %s2
  $region1: #{tpu_custom_call.1} parent=0
    #allocation2 [shape = 'u8[32768]{0}', space=vmem, size = 0x8000, scoped, tag = 'input window, operand 0, single buffered']
    #allocation3 [shape = 's32[1]{0}', space=sflag, size = 0x4, scoped, tag = 'scoped memory for tpu_custom_call.1']
    #allocation4 [shape = 's32[1]{0}', space=sflag, size = 0x4, scoped, tag = 'scoped memory for tpu_custom_call.1']
    #allocation5 [shape = 'u8[32768]{0}', space=vmem, size = 0x8000, scoped, tag = 'output window, operand 0, single buffered']
    %6 = vsyncpa [#allocation3], 0
    %7 = vsyncpa [#allocation4], 0
    // Predicated region
    $region2: #{tpu_custom_call.1} parent=1 // pred_check
      _
    $region3: #{tpu_custom_call.1} parent=1 // pred_check_branch
      %9 = sbr.rel (0) target = $region5
    $region4: #{tpu_custom_call.1} parent=1 // pred_region
      %11 = vsyncadd [#allocation3], 0
      %s12 = sshll.u32 %s0, 4
      %s13 = int_to_ptr.hbm [resolvable:$true] %s12
      %s14 = sshll.u32 [#allocation2], 4
      %s15 = int_to_ptr.vmem [resolvable:$true] %s14
      %20 = dma.hbm_to_vmem [thread:$0]  %s13, 1024, %s15, [#allocation3], 256, 256, 16
    $region5: #{tpu_custom_call.1} parent=1 // pred_fallthru
      _
    // Predicated region
    $region6: #{tpu_custom_call.1} parent=1 // pred_check
      _
    $region7: #{tpu_custom_call.1} parent=1 // pred_check_branch
      %22 = sbr.rel (0) target = $region9
    $region8: #{tpu_custom_call.1} parent=1 // pred_region
      %24 = dma.done [#allocation3], 1024
    $region9: #{tpu_custom_call.1} parent=1 // pred_fallthru
      _
    %v25 = vld [vmem:[#allocation2] sm:$0xff]
    %v26 = vld [vmem:[#allocation2 + $0x8] sm:$0xff]
    %v27 = vld [vmem:[#allocation2 + $0x10] sm:$0xff]
    %v28 = vld [vmem:[#allocation2 + $0x18] sm:$0xff]
    %v29 = vld [vmem:[#allocation2 + $0x20] sm:$0xff]
    %v30 = vld [vmem:[#allocation2 + $0x28] sm:$0xff]
    %v31 = vld [vmem:[#allocation2 + $0x30] sm:$0xff]
    %v32 = vld [vmem:[#allocation2 + $0x38] sm:$0xff]
    %v33 = vmin.f32 %v25, %v26
    %34 = vmin.xlane.f32.xlu0 %v33
    %v35 = vpop.xlane.xlu0 %34
    %v36 = vmin.f32 %v27, %v28
    %37 = vmin.xlane.f32.xlu0 %v36
    %v38 = vpop.xlane.xlu0 %37
    %v39 = vmin.f32 %v29, %v30
    %40 = vmin.xlane.f32.xlu0 %v39
    %v41 = vpop.xlane.xlu0 %40
    %v42 = vmin.f32 %v31, %v32
    %43 = vmin.xlane.f32.xlu0 %v42
    %v44 = vpop.xlane.xlu0 %43
    %v45 = vmax.f32 %v25, %v26
    %46 = vmax.xlane.f32.xlu0 %v45
    %v47 = vpop.xlane.xlu0 %46
    %v48 = vmax.f32 %v27, %v28
    %49 = vmax.xlane.f32.xlu0 %v48
    %v50 = vpop.xlane.xlu0 %49
    %v51 = vmax.f32 %v29, %v30
    %52 = vmax.xlane.f32.xlu0 %v51
    %v53 = vpop.xlane.xlu0 %52
    %v54 = vmax.f32 %v31, %v32
    %55 = vmax.xlane.f32.xlu0 %v54
    %v56 = vpop.xlane.xlu0 %55
    %v57 = vsub.f32 %v47, %v35
    %v58 = vsub.f32 %v50, %v38
    %v59 = vsub.f32 %v53, %v41
    %v60 = vsub.f32 %v56, %v44
    %v61 = vrcp.pop %v57
    %v62 = vmul.f32 %v57, %v61
    %v63 = vsub.f32 1.0, %v62
    %v64 = vmul.f32 %v61, %v63
    %v65 = vadd.f32 %v61, %v64
    %vm66 = vweird.f32 %v57
    %vm67 = vweird.f32 %v61
    %vm68 = vmor %vm66, %vm67
    %v69 = vsel %vm68, %v61, %v65
    %v70 = vand.u32 2147483647, %v57
    %vm71 = vcmp.eq.f32.partialorder %v70, 8.507059e+37
    %v72 = vand.u32 %v57, 2147483648
    %v73 = vor.u32 1.1754944e-38, %v72
    %v74 = vsel %vm71, %v73, %v69
    %v75 = vmul.f32 1.0, %v74
    %v76 = vrcp.pop %v58
    %v77 = vmul.f32 %v58, %v76
    %v78 = vsub.f32 1.0, %v77
    %v79 = vmul.f32 %v76, %v78
    %v80 = vadd.f32 %v76, %v79
    %vm81 = vweird.f32 %v58
    %vm82 = vweird.f32 %v76
    %vm83 = vmor %vm81, %vm82
    %v84 = vsel %vm83, %v76, %v80
    %v85 = vand.u32 2147483647, %v58
    %vm86 = vcmp.eq.f32.partialorder %v85, 8.507059e+37
    %v87 = vand.u32 %v58, 2147483648
    %v88 = vor.u32 1.1754944e-38, %v87
    %v89 = vsel %vm86, %v88, %v84
    %v90 = vmul.f32 1.0, %v89
    %v91 = vrcp.pop %v59
    %v92 = vmul.f32 %v59, %v91
    %v93 = vsub.f32 1.0, %v92
    %v94 = vmul.f32 %v91, %v93
    %v95 = vadd.f32 %v91, %v94
    %vm96 = vweird.f32 %v59
    %vm97 = vweird.f32 %v91
    %vm98 = vmor %vm96, %vm97
    %v99 = vsel %vm98, %v91, %v95
    %v100 = vand.u32 2147483647, %v59
    %vm101 = vcmp.eq.f32.partialorder %v100, 8.507059e+37
    %v102 = vand.u32 %v59, 2147483648
    %v103 = vor.u32 1.1754944e-38, %v102
    %v104 = vsel %vm101, %v103, %v99
    %v105 = vmul.f32 1.0, %v104
    %v106 = vrcp.pop %v60
    %v107 = vmul.f32 %v60, %v106
    %v108 = vsub.f32 1.0, %v107
    %v109 = vmul.f32 %v106, %v108
    %v110 = vadd.f32 %v106, %v109
    %vm111 = vweird.f32 %v60
    %vm112 = vweird.f32 %v106
    %vm113 = vmor %vm111, %vm112
    %v114 = vsel %vm113, %v106, %v110
    %v115 = vand.u32 2147483647, %v60
    %vm116 = vcmp.eq.f32.partialorder %v115, 8.507059e+37
    %v117 = vand.u32 %v60, 2147483648
    %v118 = vor.u32 1.1754944e-38, %v117
    %v119 = vsel %vm116, %v118, %v114
    %v120 = vmul.f32 1.0, %v119
    %v121 = vmul.f32 %v75, 2.0
    %v122 = vmul.f32 %v90, 2.0
    %v123 = vmul.f32 %v105, 2.0
    %v124 = vmul.f32 %v120, 2.0
    %v125 = vadd.f32 %v35, %v47
    %v126 = vadd.f32 %v38, %v50
    %v127 = vadd.f32 %v41, %v53
    %v128 = vadd.f32 %v44, %v56
    %v129 = vsub.f32 0.0, %v125
    %v130 = vsub.f32 0.0, %v126
    %v131 = vsub.f32 0.0, %v127
    %v132 = vsub.f32 0.0, %v128
    %v133 = vmul.f32 %v129, %v75
    %v134 = vmul.f32 %v130, %v90
    %v135 = vmul.f32 %v131, %v105
    %v136 = vmul.f32 %v132, %v120
    %v137 = vmul.f32 %v25, %v121
    %v138 = vmul.f32 %v26, %v121
    %v139 = vmul.f32 %v27, %v122
    %v140 = vmul.f32 %v28, %v122
    %v141 = vmul.f32 %v29, %v123
    %v142 = vmul.f32 %v30, %v123
    %v143 = vmul.f32 %v31, %v124
    %v144 = vmul.f32 %v32, %v124
    %v145 = vadd.f32 %v137, %v133
    %v146 = vadd.f32 %v138, %v133
    %v147 = vadd.f32 %v139, %v134
    %v148 = vadd.f32 %v140, %v134
    %v149 = vadd.f32 %v141, %v135
    %v150 = vadd.f32 %v142, %v135
    %v151 = vadd.f32 %v143, %v136
    %v152 = vadd.f32 %v144, %v136
    %153 = vst [vmem:[#allocation5] sm:$0xff] %v145
    %154 = vst [vmem:[#allocation5 + $0x8] sm:$0xff] %v146
    %155 = vst [vmem:[#allocation5 + $0x10] sm:$0xff] %v147
    %156 = vst [vmem:[#allocation5 + $0x18] sm:$0xff] %v148
    %157 = vst [vmem:[#allocation5 + $0x20] sm:$0xff] %v149
    %158 = vst [vmem:[#allocation5 + $0x28] sm:$0xff] %v150
    %159 = vst [vmem:[#allocation5 + $0x30] sm:$0xff] %v151
    %160 = vst [vmem:[#allocation5 + $0x38] sm:$0xff] %v152
    // Predicated region
    $region10: #{tpu_custom_call.1} parent=1 // pred_check
      _
    $region11: #{tpu_custom_call.1} parent=1 // pred_check_branch
      %162 = sbr.rel (0) target = $region13
    $region12: #{tpu_custom_call.1} parent=1 // pred_region
      %164 = vsyncadd [#allocation4], 0
      %s165 = sshll.u32 [#allocation5], 4
      %s166 = int_to_ptr.vmem [resolvable:$true] %s165
      %s167 = sshll.u32 %s1, 4
      %s168 = int_to_ptr.hbm [resolvable:$true] %s167
      %173 = dma.vmem_to_hbm [thread:$0]  %s166, 1024, %s168, [#allocation4], 256, 256, 16
    $region13: #{tpu_custom_call.1} parent=1 // pred_fallthru
      _
    // Predicated region
    $region14: #{tpu_custom_call.1} parent=1 // pred_check
      _
    $region15: #{tpu_custom_call.1} parent=1 // pred_check_branch
      %175 = sbr.rel (0) target = $region17
    $region16: #{tpu_custom_call.1} parent=1 // pred_region
      %177 = dma.done [#allocation4], 1024
    $region17: #{tpu_custom_call.1} parent=1 // pred_fallthru
      _
    %178 = vsyncpa [#allocation3], 1
    %179 = vsyncpa [#allocation4], 1

</llo_original>
